<compile_context>
chip_gen: v7x
topology: tpu7x:2x2x1
jax: 0.10.0
libtpu: 0.0.40
codegen_flags: <defaults>
</compile_context>

<pallas_src>
import functools

import jax
import jax.numpy as jnp
from jax.experimental import pallas as pl
from jax.experimental.pallas import tpu as pltpu

_EPS = 1e-5


# ----------------------------------------------------------------------------
# Kernels
# ----------------------------------------------------------------------------
def _conv1x1_stats_kernel(x_ref, w_ref, t_ref, st_ref):
    """t = x @ w (bias dropped, absorbed by BN); per-tile channel sum / sumsq."""
    t = jnp.dot(x_ref[...], w_ref[...], preferred_element_type=jnp.float32)
    t_ref[...] = t
    s = jnp.sum(t, axis=0, keepdims=True)
    ss = jnp.sum(t * t, axis=0, keepdims=True)
    st_ref[0] = jnp.concatenate([s, ss], axis=0)


def _bn_prelu_conv1x1_stats_kernel(t_ref, sc_ref, sh_ref, a_ref, w_ref,
                                   o_ref, st_ref):
    """y = PReLU(t*scale + shift); o = y @ w; per-tile stats of o."""
    y = t_ref[...] * sc_ref[...] + sh_ref[...]
    y = jnp.where(y >= 0, y, a_ref[...] * y)
    o = jnp.dot(y, w_ref[...], preferred_element_type=jnp.float32)
    o_ref[...] = o
    s = jnp.sum(o, axis=0, keepdims=True)
    ss = jnp.sum(o * o, axis=0, keepdims=True)
    st_ref[0] = jnp.concatenate([s, ss], axis=0)


def _dilated_conv_kernel(t_ref, sc_ref, sh_ref, a_ref, w_ref,
                         o_ref, st_ref, pad_ref, patch_ref,
                         *, H, W, C, d, OFF):
    """Per-image block: y = PReLU(BN1-affine(t)); o = dilated 3x3 conv(y).

    The conv is computed as a single large-K matmul: 9 masked, row-shifted
    copies of y are written into a (HW, 9*C) patch slab which is contracted
    against the (9*C, C) weight matrix.  Also emits BN2 partial stats of o."""
    HW = H * W

    y = t_ref[0] * sc_ref[...] + sh_ref[...]
    y = jnp.where(y >= 0, y, a_ref[...] * y)

    # Zero only the two OFF-row halo regions; the interior is fully overwritten.
    zeros_halo = jnp.zeros((OFF, C), jnp.float32)
    pad_ref[0:OFF, :] = zeros_halo
    pad_ref[OFF + HW:OFF + HW + OFF, :] = zeros_halo
    pad_ref[OFF:OFF + HW, :] = y

    # Per-pixel (h, w) coordinates; 4 compares reused across all 9 taps.
    flat = jax.lax.broadcasted_iota(jnp.int32, (HW, 1), 0)
    hh = flat // W
    ww = flat % W
    row_ok = {-d: hh >= d, 0: None, d: hh < (H - d)}
    col_ok = {-d: ww >= d, 0: None, d: ww < (W - d)}

    for ki in range(3):
        for kj in range(3):
            dy = (ki - 1) * d
            dx = (kj - 1) * d
            off = dy * W + dx
            patch = pad_ref[OFF + off:OFF + off + HW, :]
            r, c = row_ok[dy], col_ok[dx]
            mask = r if c is None else (c if r is None else (r & c))
            if mask is not None:
                patch = jnp.where(mask, patch, 0.0)
            k = ki * 3 + kj
            patch_ref[:, k * C:(k + 1) * C] = patch

    o = jnp.dot(patch_ref[...], w_ref[...], preferred_element_type=jnp.float32)
    o_ref[0] = o
    s = jnp.sum(o, axis=0, keepdims=True)
    ss = jnp.sum(o * o, axis=0, keepdims=True)
    st_ref[0] = jnp.concatenate([s, ss], axis=0)


def _residual_out_kernel(t_ref, x_ref, sc_ref, sh_ref, a3_ref, ao_ref, o_ref):
    """out = PReLU_out( PReLU3(BN3-affine(t)) + x )."""
    y = t_ref[...] * sc_ref[...] + sh_ref[...]
    y = jnp.where(y >= 0, y, a3_ref[...] * y)
    # TODO(synk): training-mode Dropout2d with p>0 (per-channel Bernoulli mask)
    # is not implemented; module default dropout_prob=0 makes it an identity.
    z = y + x_ref[...]
    o_ref[...] = jnp.where(z >= 0, z, ao_ref[...] * z)


# ----------------------------------------------------------------------------
# Wrapper (NCHW in / NCHW out, like the PyTorch module)
# ----------------------------------------------------------------------------
def _pick_row_tile(nhw, target):
    """Largest multiple of 8 that divides nhw and is <= target (else full)."""
    cand = min(target, nhw)
    cand -= cand % 8
    while cand >= 8:
        if nhw % cand == 0:
            return cand
        cand -= 8
    return nhw  # full-array block is always legal


def _bn_affine_from_stats(stats, count, gamma, beta, eps=_EPS):
    """Per-channel scale/shift for training-mode BN from partial sum/sumsq."""
    s = jnp.sum(stats.astype(jnp.float32), axis=0)   # (2, C)
    mean = s[0] / count
    var = jnp.maximum(s[1] / count - mean * mean, 0.0)
    scale = gamma.astype(jnp.float32) * jax.lax.rsqrt(var + eps)
    shift = beta.astype(jnp.float32) - mean * scale
    c = gamma.shape[0]
    return scale.reshape(1, c), shift.reshape(1, c)


def bottleneck_dilated_pallas(x_nchw, p, *, dilation, row_tile=1024):
    assert dilation >= 1
    N, C, H, W = x_nchw.shape
    HW = H * W
    NHW = N * HW
    f32 = jnp.float32

    # NCHW -> (NHW, C) channels-last flattened.
    x_flat = jnp.transpose(x_nchw, (0, 2, 3, 1)).reshape(NHW, C).astype(f32)

    # Conv weights in "activation @ weight" layout.  (Conv biases are dropped:
    # exactly absorbed by the training-mode BN mean subtraction.)
    # NOTE: for v6e/v7x production use these operands can be cast to bf16
    # (keeping f32 accumulation); kept in f32 here for the tight ref check.
    w1k = p["w1"].T.astype(f32)                                         # (C, C)
    w2k = jnp.transpose(p["w2"], (2, 3, 1, 0)).reshape(9 * C, C).astype(f32)
    w3k = p["w3"].T.astype(f32)

    row = lambda a: jnp.full((1, C), a, f32)
    a1_row, a2_row = row(p["a1"]), row(p["a2"])
    a3_row, ao_row = row(p["a3"]), row(p["a_out"])

    T = _pick_row_tile(NHW, row_tile)
    G = NHW // T

    mc = pltpu.CompilerParams(dimension_semantics=("parallel",))
    row_spec = pl.BlockSpec((T, C), lambda i: (i, 0))
    bcast_row = pl.BlockSpec((1, C), lambda i: (0, 0))
    stat_spec = pl.BlockSpec((1, 2, C), lambda i: (i, 0, 0))
    w_spec = pl.BlockSpec((C, C), lambda i: (0, 0))

    # ---------- pass 1: 1x1 conv, BN1 batch statistics -----------------------
    t1, st1 = pl.pallas_call(
        _conv1x1_stats_kernel,
        out_shape=(jax.ShapeDtypeStruct((NHW, C), f32),
                   jax.ShapeDtypeStruct((G, 2, C), f32)),
        grid=(G,),
        in_specs=[row_spec, w_spec],
        out_specs=[row_spec, stat_spec],
        compiler_params=mc,
    )(x_flat, w1k)
    sc1, sh1 = _bn_affine_from_stats(st1, NHW, p["g1"], p["be1"])

    # ---------- pass 2: BN1+PReLU -> dilated 3x3 conv (fused taps), BN2 stats -
    OFF = ((dilation * W + dilation) + 7) // 8 * 8     # halo rows, sublane-aligned
    img_spec = pl.BlockSpec((1, HW, C), lambda n: (n, 0, 0))
    t2_img, st2 = pl.pallas_call(
        functools.partial(_dilated_conv_kernel, H=H, W=W, C=C, d=dilation, OFF=OFF),
        out_shape=(jax.ShapeDtypeStruct((N, HW, C), f32),
                   jax.ShapeDtypeStruct((N, 2, C), f32)),
        grid=(N,),
        in_specs=[img_spec, bcast_row, bcast_row, bcast_row,
                  pl.BlockSpec((9 * C, C), lambda n: (0, 0))],
        out_specs=[img_spec, pl.BlockSpec((1, 2, C), lambda n: (n, 0, 0))],
        scratch_shapes=[pltpu.VMEM((HW + 2 * OFF, C), f32),
                        pltpu.VMEM((HW, 9 * C), f32)],
        compiler_params=pltpu.CompilerParams(
            dimension_semantics=("parallel",),
            vmem_limit_bytes=48 * 1024 * 1024),
    )(t1.reshape(N, HW, C), sc1, sh1, a1_row, w2k)
    sc2, sh2 = _bn_affine_from_stats(st2, NHW, p["g2"], p["be2"])
    t2 = t2_img.reshape(NHW, C)

    # ---------- pass 3: BN2+PReLU -> 1x1 conv, BN3 stats ----------------------
    t3, st3 = pl.pallas_call(
        _bn_prelu_conv1x1_stats_kernel,
        out_shape=(jax.ShapeDtypeStruct((NHW, C), f32),
                   jax.ShapeDtypeStruct((G, 2, C), f32)),
        grid=(G,),
        in_specs=[row_spec, bcast_row, bcast_row, bcast_row, w_spec],
        out_specs=[row_spec, stat_spec],
        compiler_params=mc,
    )(t2, sc2, sh2, a2_row, w3k)
    sc3, sh3 = _bn_affine_from_stats(st3, NHW, p["g3"], p["be3"])

    # ---------- pass 4: BN3+PReLU -> residual add -> final PReLU --------------
    out_flat = pl.pallas_call(
        _residual_out_kernel,
        out_shape=jax.ShapeDtypeStruct((NHW, C), f32),
        grid=(G,),
        in_specs=[row_spec, row_spec, bcast_row, bcast_row, bcast_row, bcast_row],
        out_specs=row_spec,
        compiler_params=mc,
    )(t3, x_flat, sc3, sh3, a3_row, ao_row)

    return jnp.transpose(out_flat.reshape(N, H, W, C), (0, 3, 1, 2))


# ----------------------------------------------------------------------------
# Pure-JAX reference (mirrors the PyTorch forward) for a correctness check
# ----------------------------------------------------------------------------
def bottleneck_dilated_ref(x_nchw, p, *, dilation):
    def prelu(x, a):
        return jnp.where(x >= 0, x, a * x)

    def bn(x, g, b):
        m = x.mean(axis=(0, 2, 3), keepdims=True)
        v = ((x - m) ** 2).mean(axis=(0, 2, 3), keepdims=True)
        return (x - m) / jnp.sqrt(v + 1e-5) * g[None, :, None, None] + b[None, :, None, None]

    def conv(x, w, b, pad, dil):
        y = jax.lax.conv_general_dilated(
            x, w, window_strides=(1, 1),
            padding=[(pad, pad), (pad, pad)],
            rhs_dilation=(dil, dil),
            dimension_numbers=("NCHW", "OIHW", "NCHW"),
            precision=jax.lax.Precision.HIGHEST)
        return y + b[None, :, None, None]

    y = prelu(bn(conv(x_nchw, p["w1"][:, :, None, None], p["b1"], 0, 1),
                 p["g1"], p["be1"]), p["a1"])
    y = prelu(bn(conv(y, p["w2"], p["b2"], dilation, dilation),
                 p["g2"], p["be2"]), p["a2"])
    y = prelu(bn(conv(y, p["w3"][:, :, None, None], p["b3"], 0, 1),
                 p["g3"], p["be3"]), p["a3"])
    return prelu(y + x_nchw, p["a_out"])


# ----------------------------------------------------------------------------
# Deterministic parameter init + run
# ----------------------------------------------------------------------------
def make_params(key, c):
    ks = jax.random.split(key, 12)
    f32 = jnp.float32
    return {
        "w1": 0.1 * jax.random.normal(ks[0], (c, c), f32),          # (out, in) 1x1
        "b1": 0.05 * jax.random.normal(ks[1], (c,), f32),
        "g1": 1.0 + 0.1 * jax.random.normal(ks[2], (c,), f32),
        "be1": 0.1 * jax.random.normal(ks[3], (c,), f32),
        "w2": 0.1 * jax.random.normal(ks[4], (c, c, 3, 3), f32),    # (out, in, 3, 3)
        "b2": 0.05 * jax.random.normal(ks[5], (c,), f32),
        "g2": 1.0 + 0.1 * jax.random.normal(ks[6], (c,), f32),
        "be2": 0.1 * jax.random.normal(ks[7], (c,), f32),
        "w3": 0.1 * jax.random.normal(ks[8], (c, c), f32),          # (out, in) 1x1
        "b3": 0.05 * jax.random.normal(ks[9], (c,), f32),
        "g3": 1.0 + 0.1 * jax.random.normal(ks[10], (c,), f32),
        "be3": 0.1 * jax.random.normal(ks[11], (c,), f32),
        # nn.PReLU() default init = 0.25 (single scalar slope)
        "a1": jnp.float32(0.25),
        "a2": jnp.float32(0.25),
        "a3": jnp.float32(0.25),
        "a_out": jnp.float32(0.25),
    }


if __name__ == "__main__":
    key = jax.random.PRNGKey(0)
    k_x, k_p = jax.random.split(key)

    # Residual add requires in_ch == out_ch (as in ENet usage of this block).
    N, C, H, W = 2, 32, 16, 16
    dilated = 2          # padding == dilation keeps the spatial size unchanged

    x = jax.random.normal(k_x, (N, C, H, W), jnp.float32)
    params = make_params(k_p, C)

    # row_tile=128 exercises a multi-tile grid even at this small test shape.
    out = bottleneck_dilated_pallas(x, params, dilation=dilated, row_tile=128)
    out = jax.block_until_ready(out)

    ref = jax.block_until_ready(bottleneck_dilated_ref(x, params, dilation=dilated))

    assert out.shape == (N, C, H, W), out.shape
    assert jnp.allclose(out, ref, rtol=1e-3, atol=1e-3), (
        float(jnp.max(jnp.abs(out - ref))))

    print("KERNEL_OK")
</pallas_src>

<mosaic_0001>
module attributes {stable_mosaic.version = 11 : i64} {
  func.func @_conv1x1_stats_kernel(%arg0: i32, %arg1: memref<128x32xf32, #tpu.memory_space<vmem>>, %arg2: memref<32x32xf32, #tpu.memory_space<vmem>>, %arg3: memref<128x32xf32, #tpu.memory_space<vmem>>, %arg4: memref<1x2x32xf32, #tpu.memory_space<vmem>>) attributes {dimension_semantics = [#tpu.dimension_semantics<parallel>], iteration_bounds = array<i64: 4>, scalar_prefetch = 0 : i64, scratch_operands = 0 : i64, tpu.core_type = #tpu.core_type<tc>, window_params = [{transform_indices = @transform_0, window_bounds = array<i64: 128, 32>}, {pipeline_mode = #tpu.pipeline_mode<synchronous>, transform_indices = @transform_1, window_bounds = array<i64: 32, 32>}, {transform_indices = @transform_2, window_bounds = array<i64: 128, 32>}, {transform_indices = @transform_3, window_bounds = array<i64: 1, 2, 32>}]} {
    %c0 = arith.constant 0 : index
    %c0_0 = arith.constant 0 : index
    %0 = vector.load %arg1[%c0, %c0_0] : memref<128x32xf32, #tpu.memory_space<vmem>>, vector<128x32xf32>
    %c0_1 = arith.constant 0 : index
    %c0_2 = arith.constant 0 : index
    %1 = vector.load %arg2[%c0_1, %c0_2] : memref<32x32xf32, #tpu.memory_space<vmem>>, vector<32x32xf32>
    %cst = arith.constant dense<0.000000e+00> : vector<128x32xf32>
    %2 = tpu.matmul %0, %1, %cst {dimension_numbers = #tpu.dot_dimension_numbers<[1], [0], [0], [1], [0, 0, 1, 1], [], []>} : vector<128x32xf32>, vector<32x32xf32>, vector<128x32xf32> -> vector<128x32xf32>
    %c0_3 = arith.constant 0 : index
    %c0_4 = arith.constant 0 : index
    %3 = vector.load %arg3[%c0_3, %c0_4] : memref<128x32xf32, #tpu.memory_space<vmem>>, vector<128x32xf32>
    tpu.vector_store %arg3[%c0_3, %c0_4], %2 {strides = array<i32>} : memref<128x32xf32, #tpu.memory_space<vmem>>, vector<128x32xf32>,
    %cst_5 = arith.constant dense<0.000000e+00> : vector<32xf32>
    %4 = vector.multi_reduction <add>, %2, %cst_5 [0] : vector<128x32xf32> to vector<32xf32>
    %5 = vector.shape_cast %4 : vector<32xf32> to vector<1x32xf32>
    %6 = arith.mulf %2, %2 : vector<128x32xf32>
    %cst_6 = arith.constant dense<0.000000e+00> : vector<32xf32>
    %7 = vector.multi_reduction <add>, %6, %cst_6 [0] : vector<128x32xf32> to vector<32xf32>
    %8 = vector.shape_cast %7 : vector<32xf32> to vector<1x32xf32>
    %9 = tpu.concatenate %5, %8 in 0 : vector<1x32xf32>, vector<1x32xf32> -> vector<2x32xf32>
    %c0_7 = arith.constant 0 : index
    %c0_8 = arith.constant 0 : index
    %c0_9 = arith.constant 0 : index
    %10 = vector.load %arg4[%c0_7, %c0_8, %c0_9] : memref<1x2x32xf32, #tpu.memory_space<vmem>>, vector<1x2x32xf32>
    %11 = vector.shape_cast %10 : vector<1x2x32xf32> to vector<2x32xf32>
    %12 = vector.shape_cast %9 : vector<2x32xf32> to vector<1x2x32xf32>
    tpu.vector_store %arg4[%c0_7, %c0_8, %c0_9], %12 {strides = array<i32>} : memref<1x2x32xf32, #tpu.memory_space<vmem>>, vector<1x2x32xf32>,
    return
  }
  func.func @transform_0(%arg0: i32) -> (i32, i32) {
    %c0_i32 = arith.constant 0 : i32
    %c0_i32_0 = arith.constant 0 : i32
    return %arg0, %c0_i32 : i32, i32
  }
  func.func @transform_1(%arg0: i32) -> (i32, i32) {
    %c0_i32 = arith.constant 0 : i32
    %c0_i32_0 = arith.constant 0 : i32
    %c0_i32_1 = arith.constant 0 : i32
    return %c0_i32, %c0_i32_0 : i32, i32
  }
  func.func @transform_2(%arg0: i32) -> (i32, i32) {
    %c0_i32 = arith.constant 0 : i32
    %c0_i32_0 = arith.constant 0 : i32
    return %arg0, %c0_i32 : i32, i32
  }
  func.func @transform_3(%arg0: i32) -> (i32, i32, i32) {
    %c0_i32 = arith.constant 0 : i32
    %c0_i32_0 = arith.constant 0 : i32
    %c0_i32_1 = arith.constant 0 : i32
    return %arg0, %c0_i32, %c0_i32_0 : i32, i32, i32
  }
}

</mosaic_0001>

<llo_original>
// kernel: tpu_custom_call.1
$region0: #{tpu_custom_call.1}
  #allocation0 [shape = 'u32[]', space=smem, size = 0x4, offset = 0x4, fixed_abs, tag = 'smem constant byte address 0x4 - core index']
  #allocation1 [shape = 'u32[144,128]{1,0:T(1,128)}', space=vmem, size = 0x12000, scoped, tag = 'internal scratch']
  %s0 = inlined_call_operand.vmem [shape: f32[512,32], index: 0, kind: input, shape index: {}]
  %s1 = inlined_call_operand.vmem [shape: f32[32,32], index: 1, kind: input, shape index: {}]
  %s2 = inlined_call_operand.vmem [shape: f32[512,32], index: 2, kind: output, shape index: {0}]
  %s3 = inlined_call_operand.hbm [shape: f32[4,2,32], index: 3, kind: output, shape index: {1}]
  %4 = xla_tuple %s2, %s3
  %s5 = sld [smem:[#allocation0]]
  $region49: #{tpu_custom_call.1} parent=0
    _
  %s7 = ssub.s32 1, %s5
  %s8 = scalar_select 0, %s7, %s5
  $region1: #{tpu_custom_call.1} parent=0
    #allocation2 [shape = 'u8[2048]{0}', space=vmem, size = 0x800, scoped, tag = 'output window, operand 1']
    #allocation3 [shape = 's32[2]{0}', space=sflag, size = 0x8, scoped, tag = 'scoped memory for tpu_custom_call.1']
    %9 = vsyncpa [#allocation3], 0
    %s10 = scalar_lea.sflag [#allocation3], 1
    %11 = vsyncpa %s10, 0
    loop: start=0, step=1, limit=6
    $region2: #{tpu_custom_call.1} parent=1 // loop_pre_header
      _
    $region3: #{tpu_custom_call.1} parent=1 // loop_header
      %s13 = sphi 0, %s17
      %p14 = scmp.ge.s32.totalorder %s13, 6
      %s23 = sphi 0, %s25
      %s26 = sphi 0, %s23
      %s27 = sphi 0, %s26
      %s43 = sphi 0, %s27
      %s47 = sphi 0, %s47
      %s49 = sphi 0, %s47
      %s50 = sphi 0, %s49
      %s64 = sphi 0, %s50
      %s70 = sphi 0, %s72
      %s73 = sphi 0, %s70
      %s74 = sphi 0, %s73
      %s90 = sphi 0, %s74
      %s96 = sphi 0, %s98
      %s99 = sphi 0, %s96
      %s100 = sphi 0, %s99
      %s116 = sphi 0, %s100
    $region4: #{tpu_custom_call.1} parent=1 // loop_header_branch
      %16 = sbr.rel (%p14) target = $region8
    $region5: #{tpu_custom_call.1} parent=1 // loop_body
      %s18 = ssub.s32 %s13, 1
      %s19 = ssub.s32 %s13, 2
      %s20 = sadd.s32 %s13, 1
      %s21 = ssub.s32 %s13, %s20
      %p22 = scmp.eq.s32.totalorder %s21, 0
      %s24 = sadd.s32 %s23, 1
      %s25 = scalar_select %p22, %s23, %s24
      %p28 = pneg %p22
      %p29 = scmp.eq.s32.totalorder %s13, 3
      %p30 = por %p28, %p29
      %p31 = scmp.ne.s32.totalorder %s23, %s26
      %p32 = scmp.eq.s32.totalorder %s13, 0
      %p33 = por %p31, %p32
      %p34 = scmp.ne.s32.totalorder %s23, %s26
      %p35 = scmp.eq.s32.totalorder %s18, 3
      %p36 = por %p34, %p35
      %p37 = scmp.ne.s32.totalorder %s26, %s27
      %p38 = scmp.eq.s32.totalorder %s18, 0
      %p39 = por %p37, %p38
      %p40 = scmp.ne.s32.totalorder %s26, %s27
      %p41 = scmp.eq.s32.totalorder %s19, 3
      %p42 = por %p40, %p41
      %p44 = scmp.ne.s32.totalorder %s27, %s43
      %p45 = scmp.eq.s32.totalorder %s19, 0
      %p46 = por %p44, %p45
      %s48 = sadd.s32 %s47, 1
      %p51 = scmp.eq.s32.totalorder %s13, 3
      %p52 = scmp.ne.s32.totalorder %s47, %s49
      %p53 = scmp.eq.s32.totalorder %s13, 0
      %p54 = por %p52, %p53
      %p55 = scmp.ne.s32.totalorder %s47, %s49
      %p56 = scmp.eq.s32.totalorder %s18, 3
      %p57 = por %p55, %p56
      %p58 = scmp.ne.s32.totalorder %s49, %s50
      %p59 = scmp.eq.s32.totalorder %s18, 0
      %p60 = por %p58, %p59
      %p61 = scmp.ne.s32.totalorder %s49, %s50
      %p62 = scmp.eq.s32.totalorder %s19, 3
      %p63 = por %p61, %p62
      %p65 = scmp.ne.s32.totalorder %s50, %s64
      %p66 = scmp.eq.s32.totalorder %s19, 0
      %p67 = por %p65, %p66
      %s68 = ssub.s32 %s13, %s20
      %p69 = scmp.eq.s32.totalorder %s68, 0
      %s71 = sadd.s32 %s70, 1
      %s72 = scalar_select %p69, %s70, %s71
      %p75 = pneg %p69
      %p76 = scmp.eq.s32.totalorder %s13, 3
      %p77 = por %p75, %p76
      %p78 = scmp.ne.s32.totalorder %s70, %s73
      %p79 = scmp.eq.s32.totalorder %s13, 0
      %p80 = por %p78, %p79
      %p81 = scmp.ne.s32.totalorder %s70, %s73
      %p82 = scmp.eq.s32.totalorder %s18, 3
      %p83 = por %p81, %p82
      %p84 = scmp.ne.s32.totalorder %s73, %s74
      %p85 = scmp.eq.s32.totalorder %s18, 0
      %p86 = por %p84, %p85
      %p87 = scmp.ne.s32.totalorder %s73, %s74
      %p88 = scmp.eq.s32.totalorder %s19, 3
      %p89 = por %p87, %p88
      %p91 = scmp.ne.s32.totalorder %s74, %s90
      %p92 = scmp.eq.s32.totalorder %s19, 0
      %p93 = por %p91, %p92
      %s94 = ssub.s32 %s13, %s20
      %p95 = scmp.eq.s32.totalorder %s94, 0
      %s97 = sadd.s32 %s96, 1
      %s98 = scalar_select %p95, %s96, %s97
      %p101 = pneg %p95
      %p102 = scmp.eq.s32.totalorder %s13, 3
      %p103 = por %p101, %p102
      %p104 = scmp.ne.s32.totalorder %s96, %s99
      %p105 = scmp.eq.s32.totalorder %s13, 0
      %p106 = por %p104, %p105
      %p107 = scmp.ne.s32.totalorder %s96, %s99
      %p108 = scmp.eq.s32.totalorder %s18, 3
      %p109 = por %p107, %p108
      %p110 = scmp.ne.s32.totalorder %s99, %s100
      %p111 = scmp.eq.s32.totalorder %s18, 0
      %p112 = por %p110, %p111
      %p113 = scmp.ne.s32.totalorder %s99, %s100
      %p114 = scmp.eq.s32.totalorder %s19, 3
      %p115 = por %p113, %p114
      %p117 = scmp.ne.s32.totalorder %s100, %s116
      %p118 = scmp.eq.s32.totalorder %s19, 0
      %p119 = por %p117, %p118
      %p120 = scmp.le.s32.totalorder 1, %s13
      %p121 = scmp.lt.s32.totalorder %s13, 5
      %p122 = pnand %p120, %p121
      %p123 = pneg %p122
      // Predicated region
      $region9: #{tpu_custom_call.1} parent=5 // pred_check
        _
      $region10: #{tpu_custom_call.1} parent=5 // pred_check_branch
        %125 = sbr.rel (%p122) target = $region12
      $region11: #{tpu_custom_call.1} parent=5 // pred_region
        %s126 = ssub.s32 %s13, 1
        // Predicated region
        $region13: #{tpu_custom_call.1} parent=11 // pred_check
          %p127 = pneg %p60
        $region14: #{tpu_custom_call.1} parent=11 // pred_check_branch
          %129 = sbr.rel (%p127) target = $region16
        $region15: #{tpu_custom_call.1} parent=11 // pred_region
          _
        $region16: #{tpu_custom_call.1} parent=11 // pred_fallthru
          _
      $region12: #{tpu_custom_call.1} parent=5 // pred_fallthru
        _
      %p130 = scmp.lt.s32.totalorder %s13, 4
      // Predicated region
      $region17: #{tpu_custom_call.1} parent=5 // pred_check
        %p131 = pneg %p130
      $region18: #{tpu_custom_call.1} parent=5 // pred_check_branch
        %133 = sbr.rel (%p131) target = $region20
      $region19: #{tpu_custom_call.1} parent=5 // pred_region
        // Predicated region
        $region21: #{tpu_custom_call.1} parent=19 // pred_check
          %p134 = pneg %p33
        $region22: #{tpu_custom_call.1} parent=19 // pred_check_branch
          %136 = sbr.rel (%p134) target = $region24
        $region23: #{tpu_custom_call.1} parent=19 // pred_region
          %s137 = smul.u32 16, %s13
          %p138 = scmp.lt.s32.totalorder %s137, 63
          %s139 = scalar_select %p138, %s137, 63
          %s140 = smul.addr %s139, 8
          %s141 = scalar_lea.vmem %s0, %s140
          %s142 = smul.u32 16, %s13
        $region24: #{tpu_custom_call.1} parent=19 // pred_fallthru
          _
      $region20: #{tpu_custom_call.1} parent=5 // pred_fallthru
        _
      %p143 = scmp.le.s32.totalorder 1, %s13
      %p144 = scmp.lt.s32.totalorder %s13, 5
      %p145 = pnand %p143, %p144
      %p146 = pneg %p145
      // Predicated region
      $region25: #{tpu_custom_call.1} parent=5 // pred_check
        _
      $region26: #{tpu_custom_call.1} parent=5 // pred_check_branch
        %148 = sbr.rel (%p145) target = $region28
      $region27: #{tpu_custom_call.1} parent=5 // pred_region
        %s149 = ssub.s32 %s13, 1
        %s150 = smul.u32 16, %s18
        %p151 = scmp.lt.s32.totalorder %s150, 63
        %s152 = scalar_select %p151, %s150, 63
        %s153 = smul.addr %s152, 8
        %s154 = scalar_lea.vmem %s0, %s153
        %p155 = pneg %p39
        %p156 = pneg %p36
        %p157 = pneg %p60
        %p158 = pneg %p57
        %p159 = pneg %p86
        %p160 = pneg %p83
        %s161 = smul.u32 16, %s18
        %p162 = scmp.lt.s32.totalorder %s161, 63
        %s163 = scalar_select %p162, %s161, 63
        %s164 = smul.addr %s163, 8
        %s165 = scalar_lea.vmem %s2, %s164
        %p166 = pneg %p112
        %p167 = pneg %p109
        %s168 = sand.u32 %s99, 1
        %s169 = scalar_lea.sflag [#allocation3], %s168
        %s170 = sand.u32 %s99, 1
        %s171 = smul.addr %s170, 2
        %s172 = scalar_lea.vmem [#allocation2], %s171
        %s173 = smul.u32 16, %s18
        %p174 = scmp.lt.s32.totalorder %s173, 63
        %s175 = scalar_select %p174, %s173, 63
        %s176 = smul.addr %s175, 8
        %s177 = scalar_lea.vmem %s0, %s176
        %s178 = smul.u32 16, %s18
        %s179 = smul.u32 16, %s18
        %p180 = scmp.lt.s32.totalorder %s179, 63
        %s181 = scalar_select %p180, %s179, 63
        %s182 = smul.addr %s181, 8
        %s183 = scalar_lea.vmem %s2, %s182
        %s184 = smul.u32 16, %s18
        %v185 = vld [vmem:[%s177] sm:$0xff]
        %v186 = vld [vmem:[%s177 + $0x8] sm:$0xff]
        %v187 = vld [vmem:[%s177 + $0x10] sm:$0xff]
        %v188 = vld [vmem:[%s177 + $0x18] sm:$0xff]
        %v189 = vld [vmem:[%s177 + $0x20] sm:$0xff]
        %v190 = vld [vmem:[%s177 + $0x28] sm:$0xff]
        %v191 = vld [vmem:[%s177 + $0x30] sm:$0xff]
        %v192 = vld [vmem:[%s177 + $0x38] sm:$0xff]
        %v193 = vld [vmem:[%s177 + $0x40] sm:$0xff]
        %v194 = vld [vmem:[%s177 + $0x48] sm:$0xff]
        %v195 = vld [vmem:[%s177 + $0x50] sm:$0xff]
        %v196 = vld [vmem:[%s177 + $0x58] sm:$0xff]
        %v197 = vld [vmem:[%s177 + $0x60] sm:$0xff]
        %v198 = vld [vmem:[%s177 + $0x68] sm:$0xff]
        %v199 = vld [vmem:[%s177 + $0x70] sm:$0xff]
        %v200 = vld [vmem:[%s177 + $0x78] sm:$0xff]
        %v201 = vld [vmem:[%s1] sm:$0xff]
        %v202 = vld [vmem:[%s1 + $0x8] sm:$0xff]
        %v203 = vld [vmem:[%s1 + $0x10] sm:$0xff]
        %v204 = vld [vmem:[%s1 + $0x18] sm:$0xff]
        %vm205 = vcmask 261120
        %v207 = vsel %vm205, %v185, 0
        %v210 = vsel %vm205, %v186, 0
        %v213 = vsel %vm205, %v187, 0
        %v216 = vsel %vm205, %v188, 0
        %v219 = vsel %vm205, %v189, 0
        %v222 = vsel %vm205, %v190, 0
        %v225 = vsel %vm205, %v191, 0
        %v228 = vsel %vm205, %v192, 0
        %v231 = vsel %vm205, %v193, 0
        %v234 = vsel %vm205, %v194, 0
        %v237 = vsel %vm205, %v195, 0
        %v240 = vsel %vm205, %v196, 0
        %v243 = vsel %vm205, %v197, 0
        %v246 = vsel %vm205, %v198, 0
        %v249 = vsel %vm205, %v199, 0
        %v252 = vsel %vm205, %v200, 0
        %254 = vmatprep.subr.mxu0 0.0
        %255 = vmatpush1.msra.mxu0 %v201
        %256 = vmatprep.subr.mxu0 0.0
        %257 = vmatpush1.msra.mxu0 %v202
        %258 = vmatprep.subr.mxu0 0.0
        %259 = vmatpush1.msra.mxu0 %v203
        %260 = vmatprep.subr.mxu0 0.0
        %261 = vmatpush1.msra.mxu0 %v204
        %262 = vmatprep.subr.mxu0 0.0
        %263 = vmatpush1.msra.mxu0 0.0
        %264 = vmatprep.subr.mxu0 0.0
        %265 = vmatpush1.msra.mxu0 0.0
        %266 = vmatprep.subr.mxu0 0.0
        %267 = vmatpush1.msra.mxu0 0.0
        %268 = vmatprep.subr.mxu0 0.0
        %269 = vmatpush1.msra.mxu0 0.0
        %270 = vmatprep.subr.mxu0 0.0
        %271 = vmatpush1.msra.mxu0 0.0
        %272 = vmatprep.subr.mxu0 0.0
        %273 = vmatpush1.msra.mxu0 0.0
        %274 = vmatprep.subr.mxu0 0.0
        %275 = vmatpush1.msra.mxu0 0.0
        %276 = vmatprep.subr.mxu0 0.0
        %277 = vmatpush1.msra.mxu0 0.0
        %278 = vmatprep.subr.mxu0 0.0
        %279 = vmatpush1.msra.mxu0 0.0
        %280 = vmatprep.subr.mxu0 0.0
        %281 = vmatpush1.msra.mxu0 0.0
        %282 = vmatprep.subr.mxu0 0.0
        %283 = vmatpush1.msra.mxu0 0.0
        %284 = vmatprep.subr.mxu0 0.0
        %285 = vmatpush1.msra.mxu0 0.0
        %286 = vmatprep.subr.mxu0 0.0
        %287 = vmatpush1.msra.mxu0 0.0
        %288 = vmatprep.subr.mxu0 0.0
        %289 = vmatpush1.msra.mxu0 0.0
        %290 = vmatprep.subr.mxu0 0.0
        %291 = vmatpush1.msra.mxu0 0.0
        %292 = vmatprep.subr.mxu0 0.0
        %293 = vmatpush1.msra.mxu0 0.0
        %294 = vmatprep.subr.mxu0 0.0
        %295 = vmatpush1.msra.mxu0 0.0
        %296 = vmatprep.subr.mxu0 0.0
        %297 = vmatpush1.msra.mxu0 0.0
        %298 = vmatprep.subr.mxu0 0.0
        %299 = vmatpush1.msra.mxu0 0.0
        %300 = vmatprep.subr.mxu0 0.0
        %301 = vmatpush1.msra.mxu0 0.0
        %302 = vmatprep.subr.mxu0 0.0
        %303 = vmatpush1.msra.mxu0 0.0
        %304 = vmatprep.subr.mxu0 0.0
        %305 = vmatpush1.msra.mxu0 0.0
        %306 = vmatprep.subr.mxu0 0.0
        %307 = vmatpush1.msra.mxu0 0.0
        %308 = vmatprep.subr.mxu0 0.0
        %309 = vmatpush1.msra.mxu0 0.0
        %310 = vmatprep.subr.mxu0 0.0
        %311 = vmatpush1.msra.mxu0 0.0
        %312 = vmatprep.subr.mxu0 0.0
        %313 = vmatpush1.msra.mxu0 0.0
        %314 = vmatprep.subr.mxu0 0.0
        %315 = vmatpush1.msra.mxu0 0.0
        %316 = vmatprep.subr.mxu0 0.0
        %317 = vmatpush1.msra.mxu0 0.0
        %318 = vmatprep.mubr.f32.mxu0 0.0
        %319 = vmatmul.mubr.f32.gmra.mrb[0].mxu0 %v207
        %v320 = vpop.f32.mrb[0].mxu0
        %v321 = vadd.f32 0.0, %v320
        %v322 = vpop.f32.mrb[0].mxu0
        %323 = vmatprep.mubr.f32.mxu0 0.0
        %324 = vmatmul.mubr.f32.gmra.mrb[0].mxu0 %v210
        %v325 = vpop.f32.mrb[0].mxu0
        %v326 = vadd.f32 0.0, %v325
        %v327 = vpop.f32.mrb[0].mxu0
        %328 = vmatprep.mubr.f32.mxu0 0.0
        %329 = vmatmul.mubr.f32.gmra.mrb[0].mxu0 %v213
        %v330 = vpop.f32.mrb[0].mxu0
        %v331 = vadd.f32 0.0, %v330
        %v332 = vpop.f32.mrb[0].mxu0
        %333 = vmatprep.mubr.f32.mxu0 0.0
        %334 = vmatmul.mubr.f32.gmra.mrb[0].mxu0 %v216
        %v335 = vpop.f32.mrb[0].mxu0
        %v336 = vadd.f32 0.0, %v335
        %v337 = vpop.f32.mrb[0].mxu0
        %338 = vmatprep.mubr.f32.mxu0 0.0
        %339 = vmatmul.mubr.f32.gmra.mrb[0].mxu0 %v219
        %v340 = vpop.f32.mrb[0].mxu0
        %v341 = vadd.f32 0.0, %v340
        %v342 = vpop.f32.mrb[0].mxu0
        %343 = vmatprep.mubr.f32.mxu0 0.0
        %344 = vmatmul.mubr.f32.gmra.mrb[0].mxu0 %v222
        %v345 = vpop.f32.mrb[0].mxu0
        %v346 = vadd.f32 0.0, %v345
        %v347 = vpop.f32.mrb[0].mxu0
        %348 = vmatprep.mubr.f32.mxu0 0.0
        %349 = vmatmul.mubr.f32.gmra.mrb[0].mxu0 %v225
        %v350 = vpop.f32.mrb[0].mxu0
        %v351 = vadd.f32 0.0, %v350
        %v352 = vpop.f32.mrb[0].mxu0
        %353 = vmatprep.mubr.f32.mxu0 0.0
        %354 = vmatmul.mubr.f32.gmra.mrb[0].mxu0 %v228
        %v355 = vpop.f32.mrb[0].mxu0
        %v356 = vadd.f32 0.0, %v355
        %v357 = vpop.f32.mrb[0].mxu0
        %358 = vmatprep.mubr.f32.mxu0 0.0
        %359 = vmatmul.mubr.f32.gmra.mrb[0].mxu0 %v231
        %v360 = vpop.f32.mrb[0].mxu0
        %v361 = vadd.f32 0.0, %v360
        %v362 = vpop.f32.mrb[0].mxu0
        %363 = vmatprep.mubr.f32.mxu0 0.0
        %364 = vmatmul.mubr.f32.gmra.mrb[0].mxu0 %v234
        %v365 = vpop.f32.mrb[0].mxu0
        %v366 = vadd.f32 0.0, %v365
        %v367 = vpop.f32.mrb[0].mxu0
        %368 = vmatprep.mubr.f32.mxu0 0.0
        %369 = vmatmul.mubr.f32.gmra.mrb[0].mxu0 %v237
        %v370 = vpop.f32.mrb[0].mxu0
        %v371 = vadd.f32 0.0, %v370
        %v372 = vpop.f32.mrb[0].mxu0
        %373 = vmatprep.mubr.f32.mxu0 0.0
        %374 = vmatmul.mubr.f32.gmra.mrb[0].mxu0 %v240
        %v375 = vpop.f32.mrb[0].mxu0
        %v376 = vadd.f32 0.0, %v375
        %v377 = vpop.f32.mrb[0].mxu0
        %378 = vmatprep.mubr.f32.mxu0 0.0
        %379 = vmatmul.mubr.f32.gmra.mrb[0].mxu0 %v243
        %v380 = vpop.f32.mrb[0].mxu0
        %v381 = vadd.f32 0.0, %v380
        %v382 = vpop.f32.mrb[0].mxu0
        %383 = vmatprep.mubr.f32.mxu0 0.0
        %384 = vmatmul.mubr.f32.gmra.mrb[0].mxu0 %v246
        %v385 = vpop.f32.mrb[0].mxu0
        %v386 = vadd.f32 0.0, %v385
        %v387 = vpop.f32.mrb[0].mxu0
        %388 = vmatprep.mubr.f32.mxu0 0.0
        %389 = vmatmul.mubr.f32.gmra.mrb[0].mxu0 %v249
        %v390 = vpop.f32.mrb[0].mxu0
        %v391 = vadd.f32 0.0, %v390
        %v392 = vpop.f32.mrb[0].mxu0
        %393 = vmatprep.mubr.f32.mxu0 0.0
        %394 = vmatmul.mubr.f32.gmra.mrb[0].mxu0 %v252
        %v395 = vpop.f32.mrb[0].mxu0
        %v396 = vadd.f32 0.0, %v395
        %v397 = vpop.f32.mrb[0].mxu0
        %398 = vdwg.mxu0
        %399 = vst.msk [vmem:[%s183] sm:$0xff] %vm205, %v321
        %400 = vst.msk [vmem:[%s183 + $0x8] sm:$0xff] %vm205, %v326
        %401 = vst.msk [vmem:[%s183 + $0x10] sm:$0xff] %vm205, %v331
        %402 = vst.msk [vmem:[%s183 + $0x18] sm:$0xff] %vm205, %v336
        %403 = vst.msk [vmem:[%s183 + $0x20] sm:$0xff] %vm205, %v341
        %404 = vst.msk [vmem:[%s183 + $0x28] sm:$0xff] %vm205, %v346
        %405 = vst.msk [vmem:[%s183 + $0x30] sm:$0xff] %vm205, %v351
        %406 = vst.msk [vmem:[%s183 + $0x38] sm:$0xff] %vm205, %v356
        %407 = vst.msk [vmem:[%s183 + $0x40] sm:$0xff] %vm205, %v361
        %408 = vst.msk [vmem:[%s183 + $0x48] sm:$0xff] %vm205, %v366
        %409 = vst.msk [vmem:[%s183 + $0x50] sm:$0xff] %vm205, %v371
        %410 = vst.msk [vmem:[%s183 + $0x58] sm:$0xff] %vm205, %v376
        %411 = vst.msk [vmem:[%s183 + $0x60] sm:$0xff] %vm205, %v381
        %412 = vst.msk [vmem:[%s183 + $0x68] sm:$0xff] %vm205, %v386
        %413 = vst.msk [vmem:[%s183 + $0x70] sm:$0xff] %vm205, %v391
        %414 = vst.msk [vmem:[%s183 + $0x78] sm:$0xff] %vm205, %v396
        %v415 = vsel %vm205, %v321, 0.0
        %v416 = vsel %vm205, %v326, 0.0
        %v417 = vadd.f32 %v415, %v416
        %v418 = vsel %vm205, %v331, 0.0
        %v419 = vadd.f32 %v417, %v418
        %v420 = vsel %vm205, %v336, 0.0
        %v421 = vadd.f32 %v419, %v420
        %v422 = vsel %vm205, %v341, 0.0
        %v423 = vadd.f32 %v421, %v422
        %v424 = vsel %vm205, %v346, 0.0
        %v425 = vadd.f32 %v423, %v424
        %v426 = vsel %vm205, %v351, 0.0
        %v427 = vadd.f32 %v425, %v426
        %v428 = vsel %vm205, %v356, 0.0
        %v429 = vadd.f32 %v427, %v428
        %v430 = vsel %vm205, %v361, 0.0
        %v431 = vadd.f32 %v429, %v430
        %v432 = vsel %vm205, %v366, 0.0
        %v433 = vadd.f32 %v431, %v432
        %v434 = vsel %vm205, %v371, 0.0
        %v435 = vadd.f32 %v433, %v434
        %v436 = vsel %vm205, %v376, 0.0
        %v437 = vadd.f32 %v435, %v436
        %v438 = vsel %vm205, %v381, 0.0
        %v439 = vadd.f32 %v437, %v438
        %v440 = vsel %vm205, %v386, 0.0
        %v441 = vadd.f32 %v439, %v440
        %v442 = vsel %vm205, %v391, 0.0
        %v443 = vadd.f32 %v441, %v442
        %v444 = vsel %vm205, %v396, 0.0
        %v445 = vadd.f32 %v443, %v444
        %v446 = vrot.slane %v445, 4
        %v447 = vadd.f32 %v445, %v446
        %v448 = vrot.slane %v447, 2
        %v449 = vadd.f32 %v447, %v448
        %v450 = vrot.slane %v449, 1
        %v451 = vadd.f32 %v449, %v450
        %v452 = vmul.f32 %v321, %v321
        %v453 = vmul.f32 %v326, %v326
        %v454 = vmul.f32 %v331, %v331
        %v455 = vmul.f32 %v336, %v336
        %v456 = vmul.f32 %v341, %v341
        %v457 = vmul.f32 %v346, %v346
        %v458 = vmul.f32 %v351, %v351
        %v459 = vmul.f32 %v356, %v356
        %v460 = vmul.f32 %v361, %v361
        %v461 = vmul.f32 %v366, %v366
        %v462 = vmul.f32 %v371, %v371
        %v463 = vmul.f32 %v376, %v376
        %v464 = vmul.f32 %v381, %v381
        %v465 = vmul.f32 %v386, %v386
        %v466 = vmul.f32 %v391, %v391
        %v467 = vmul.f32 %v396, %v396
        %v468 = vsel %vm205, %v452, 0.0
        %v469 = vsel %vm205, %v453, 0.0
        %v470 = vadd.f32 %v468, %v469
        %v471 = vsel %vm205, %v454, 0.0
        %v472 = vadd.f32 %v470, %v471
        %v473 = vsel %vm205, %v455, 0.0
        %v474 = vadd.f32 %v472, %v473
        %v475 = vsel %vm205, %v456, 0.0
        %v476 = vadd.f32 %v474, %v475
        %v477 = vsel %vm205, %v457, 0.0
        %v478 = vadd.f32 %v476, %v477
        %v479 = vsel %vm205, %v458, 0.0
        %v480 = vadd.f32 %v478, %v479
        %v481 = vsel %vm205, %v459, 0.0
        %v482 = vadd.f32 %v480, %v481
        %v483 = vsel %vm205, %v460, 0.0
        %v484 = vadd.f32 %v482, %v483
        %v485 = vsel %vm205, %v461, 0.0
        %v486 = vadd.f32 %v484, %v485
        %v487 = vsel %vm205, %v462, 0.0
        %v488 = vadd.f32 %v486, %v487
        %v489 = vsel %vm205, %v463, 0.0
        %v490 = vadd.f32 %v488, %v489
        %v491 = vsel %vm205, %v464, 0.0
        %v492 = vadd.f32 %v490, %v491
        %v493 = vsel %vm205, %v465, 0.0
        %v494 = vadd.f32 %v492, %v493
        %v495 = vsel %vm205, %v466, 0.0
        %v496 = vadd.f32 %v494, %v495
        %v497 = vsel %vm205, %v467, 0.0
        %v498 = vadd.f32 %v496, %v497
        %v499 = vrot.slane %v498, 4
        %v500 = vadd.f32 %v498, %v499
        %v501 = vrot.slane %v500, 2
        %v502 = vadd.f32 %v500, %v501
        %v503 = vrot.slane %v502, 1
        %v504 = vadd.f32 %v502, %v503
        %vm505 = vcmask 1040384
        %v506 = vsel %vm505, %v451, %v504
        %vm507 = vcmask 254976
        %508 = vst.msk [vmem:[%s172] sm:$0x3] %vm507, %v506
        %s509 = smul.u32 16, %s18
        %p510 = scmp.lt.s32.totalorder %s509, 63
        %s511 = scalar_select %p510, %s509, 63
        %s512 = smul.addr %s511, 8
        %s513 = scalar_lea.vmem %s2, %s512
        %s514 = sand.u32 %s99, 1
        %s515 = scalar_lea.sflag [#allocation3], %s514
        %s516 = sand.u32 %s99, 1
        %s517 = smul.addr %s516, 2
        %s518 = scalar_lea.vmem [#allocation2], %s517
        // Predicated region
        $region29: #{tpu_custom_call.1} parent=27 // pred_check
          %p519 = pneg %p83
        $region30: #{tpu_custom_call.1} parent=27 // pred_check_branch
          %521 = sbr.rel (%p519) target = $region32
        $region31: #{tpu_custom_call.1} parent=27 // pred_region
          %s522 = smul.u32 16, %s18
        $region32: #{tpu_custom_call.1} parent=27 // pred_fallthru
          _
        // Predicated region
        $region33: #{tpu_custom_call.1} parent=27 // pred_check
          %p523 = pneg %p109
        $region34: #{tpu_custom_call.1} parent=27 // pred_check_branch
          %525 = sbr.rel (%p523) target = $region36
        $region35: #{tpu_custom_call.1} parent=27 // pred_region
          %s527 = ssub.s32 32, 32
          %528 = vsyncadd %s515, %s527
          %s529 = smul.addr %s18, 32
          %s530 = scalar_lea.hbm %s3, %s529
          %s532 = sshll.u32 %s518, 4
          %s533 = int_to_ptr.vmem [resolvable:$true] %s532
          %535 = dma.vmem_to_hbm [thread:$0]  %s533, 32, %s530, %s515
        $region36: #{tpu_custom_call.1} parent=27 // pred_fallthru
          _
      $region28: #{tpu_custom_call.1} parent=5 // pred_fallthru
        _
      %p536 = scmp.le.s32.totalorder 2, %s13
      // Predicated region
      $region37: #{tpu_custom_call.1} parent=5 // pred_check
        %p537 = pneg %p536
      $region38: #{tpu_custom_call.1} parent=5 // pred_check_branch
        %539 = sbr.rel (%p537) target = $region40
      $region39: #{tpu_custom_call.1} parent=5 // pred_region
        %s540 = ssub.s32 %s13, 2
        // Predicated region
        $region41: #{tpu_custom_call.1} parent=39 // pred_check
          %p541 = pneg %p89
        $region42: #{tpu_custom_call.1} parent=39 // pred_check_branch
          %543 = sbr.rel (%p541) target = $region44
        $region43: #{tpu_custom_call.1} parent=39 // pred_region
          %s544 = smul.u32 16, %s19
          %p545 = scmp.lt.s32.totalorder %s544, 63
          %s546 = scalar_select %p545, %s544, 63
          %s547 = smul.addr %s546, 8
          %s548 = scalar_lea.vmem %s2, %s547
        $region44: #{tpu_custom_call.1} parent=39 // pred_fallthru
          _
        // Predicated region
        $region45: #{tpu_custom_call.1} parent=39 // pred_check
          %p549 = pneg %p115
        $region46: #{tpu_custom_call.1} parent=39 // pred_check_branch
          %551 = sbr.rel (%p549) target = $region48
        $region47: #{tpu_custom_call.1} parent=39 // pred_region
          %s552 = sand.u32 %s100, 1
          %s553 = scalar_lea.sflag [#allocation3], %s552
          %s554 = sand.u32 %s100, 1
          %s555 = smul.addr %s554, 2
          %s556 = scalar_lea.vmem [#allocation2], %s555
          %557 = dma.done %s553, 32
        $region48: #{tpu_custom_call.1} parent=39 // pred_fallthru
          _
      $region40: #{tpu_custom_call.1} parent=5 // pred_fallthru
        _
    $region6: #{tpu_custom_call.1} parent=1 // loop_footer
      %s17 = sadd.s32 1, %s13
    $region7: #{tpu_custom_call.1} parent=1 // loop_footer_branch
      %12 = sbr.rel target = $region3
    $region8: #{tpu_custom_call.1} parent=1 // loop_exit
      _
    %558 = vsyncpa [#allocation3], 1
    %s559 = scalar_lea.sflag [#allocation3], 1
    %560 = vsyncpa %s559, 1

</llo_original>
